<compile_context>
chip_gen: v5e
topology: v5e:2x2
jax: 0.10.0
libtpu: 0.0.40
codegen_flags: <defaults>
</compile_context>

<pallas_src>
import functools

import jax
import jax.numpy as jnp
from jax.experimental import pallas as pl
from jax.experimental.pallas import tpu as pltpu

_LANES = 512                        # preferred lane-dense last dim (4x vreg lane width)
_MAX_TILE_BYTES = 2 * 1024 * 1024   # ~2 MiB per f32 stream buffer per pipeline slot
_VMEM_LIMIT = 40 * 1024 * 1024      # double-buffered 7-stream pipeline fits on all gens


def _elementwise_kernel(mask_dtype, x_ref, add_ref, sub_ref, mul_ref, div_ref,
                        gt_ref, lt_ref):
    x = x_ref[...]
    add_ref[...] = x + 2.0
    sub_ref[...] = x - 1.0
    mul_ref[...] = x * 3.0
    div_ref[...] = x * 0.25                      # x / 4 exactly (power-of-two)
    gt_ref[...] = (x > 1.0).astype(mask_dtype)
    lt_ref[...] = (x < 5.0).astype(mask_dtype)


def _bool_mask_outputs_supported():
    """Probe once whether Mosaic accepts jnp.bool_ pallas outputs on this backend."""
    try:
        def probe(x_ref, o_ref):
            o_ref[...] = x_ref[...] > 1.0

        fn = pl.pallas_call(
            probe, out_shape=jax.ShapeDtypeStruct((8, 128), jnp.bool_))
        jax.jit(fn).lower(
            jax.ShapeDtypeStruct((8, 128), jnp.float32)).compile()
        return True
    except Exception:
        return False


_MASK_DTYPE = jnp.bool_ if _bool_mask_outputs_supported() else jnp.int8


def _choose_layout(n):
    """Pick (lanes, padded_n) so the flat array folds into a lane-dense slab."""
    for lanes in (_LANES, 256, 128):
        if n % lanes == 0:
            return lanes, n
    # Ragged fallback: pad to a multiple of 128 lanes (costs an extra tail copy).
    lanes = 128
    return lanes, pl.cdiv(n, lanes) * lanes


@jax.jit
def pt_module_forward(x):
    orig_shape = x.shape
    orig_dtype = x.dtype
    # TODO(synk): integer inputs are computed in f32 and cast back, which does not
    # reproduce PyTorch's integer-overflow or int->float true-division semantics.
    if jnp.issubdtype(orig_dtype, jnp.floating):
        compute_dtype = orig_dtype
    else:
        compute_dtype = jnp.float32

    flat = x.reshape(-1).astype(compute_dtype)
    n = flat.shape[0]
    lanes, padded = _choose_layout(n)
    if padded != n:
        flat = jnp.pad(flat, (0, padded - n))
    rows = padded // lanes
    x2d = flat.reshape(rows, lanes)

    elem_bytes = jnp.dtype(compute_dtype).itemsize

    # Tile rows: biggest tile keeping each f32 stream buffer <= ~2 MiB, while
    # splitting into >= 2 grid steps whenever rows > 8 so both v7x TensorCores
    # get work (free on single-TC v5e/v6e).
    max_tile_rows = max(8, _MAX_TILE_BYTES // (lanes * elem_bytes))
    if rows <= 8:
        tile_rows = rows                              # single full-extent block
    else:
        half = -(-rows // 2)                          # cdiv(rows, 2)
        tile_rows = min(max_tile_rows, max(8, ((half + 7) // 8) * 8))
    grid = (pl.cdiv(rows, tile_rows),)

    spec = pl.BlockSpec((tile_rows, lanes), lambda i: (i, 0))
    f_out = jax.ShapeDtypeStruct((rows, lanes), compute_dtype)
    m_out = jax.ShapeDtypeStruct((rows, lanes), _MASK_DTYPE)

    cost = pl.CostEstimate(
        flops=6 * padded,
        transcendentals=0,
        bytes_accessed=(5 * elem_bytes + 2) * padded,
    )

    add2d, sub2d, mul2d, div2d, gt2d, lt2d = pl.pallas_call(
        functools.partial(_elementwise_kernel, _MASK_DTYPE),
        out_shape=(f_out, f_out, f_out, f_out, m_out, m_out),
        grid=grid,
        in_specs=[spec],
        out_specs=(spec,) * 6,
        compiler_params=pltpu.CompilerParams(
            dimension_semantics=("parallel",),
            vmem_limit_bytes=_VMEM_LIMIT,
        ),
        cost_estimate=cost,
    )(x2d)

    def unfold(a, dtype):
        if padded != n:
            a = a.reshape(-1)[:n]
        out = a.reshape(orig_shape)
        return out if out.dtype == dtype else out.astype(dtype)

    return (
        unfold(add2d, orig_dtype),
        unfold(sub2d, orig_dtype),
        unfold(mul2d, orig_dtype),
        unfold(div2d, orig_dtype),
        unfold(gt2d, jnp.bool_),
        unfold(lt2d, jnp.bool_),
    )


if __name__ == "__main__":
    key = jax.random.PRNGKey(0)
    # NCHW input, small shapes: batch=2, channels=4, spatial=16x16.
    x = jax.random.normal(key, (2, 4, 16, 16), dtype=jnp.float32) * 3.0

    outs = pt_module_forward(x)
    outs = jax.block_until_ready(outs)

    # Correctness check against plain-JAX reference.
    refs = (x + 2, x - 1, x * 3, x / 4, x > 1, x < 5)
    for got, ref in zip(outs, refs):
        assert got.shape == ref.shape and got.dtype == ref.dtype
        if got.dtype == jnp.bool_:
            assert bool(jnp.all(got == ref))
        else:
            assert bool(jnp.allclose(got, ref, atol=1e-6))

    print("KERNEL_OK")
</pallas_src>

<mosaic_0001>
module attributes {stable_mosaic.version = 11 : i64} {
  func.func @_elementwise_kernel(%arg0: i32, %arg1: memref<4x512xf32, #tpu.memory_space<vmem>>, %arg2: memref<4x512xf32, #tpu.memory_space<vmem>>, %arg3: memref<4x512xf32, #tpu.memory_space<vmem>>, %arg4: memref<4x512xf32, #tpu.memory_space<vmem>>, %arg5: memref<4x512xf32, #tpu.memory_space<vmem>>, %arg6: memref<4x512xi8, #tpu.memory_space<vmem>>, %arg7: memref<4x512xi8, #tpu.memory_space<vmem>>) attributes {dimension_semantics = [#tpu.dimension_semantics<parallel>], iteration_bounds = array<i64: 1>, scalar_prefetch = 0 : i64, scratch_operands = 0 : i64, tpu.core_type = #tpu.core_type<tc>, window_params = [{transform_indices = @transform_0, window_bounds = array<i64: 4, 512>}, {transform_indices = @transform_1, window_bounds = array<i64: 4, 512>}, {transform_indices = @transform_2, window_bounds = array<i64: 4, 512>}, {transform_indices = @transform_3, window_bounds = array<i64: 4, 512>}, {transform_indices = @transform_4, window_bounds = array<i64: 4, 512>}, {transform_indices = @transform_5, window_bounds = array<i64: 4, 512>}, {transform_indices = @transform_6, window_bounds = array<i64: 4, 512>}]} {
    %c0 = arith.constant 0 : index
    %c0_0 = arith.constant 0 : index
    %0 = vector.load %arg1[%c0, %c0_0] : memref<4x512xf32, #tpu.memory_space<vmem>>, vector<4x512xf32>
    %cst = arith.constant 2.000000e+00 : f32
    %1 = vector.broadcast %cst : f32 to vector<4x512xf32>
    %2 = arith.addf %0, %1 : vector<4x512xf32>
    %c0_1 = arith.constant 0 : index
    %c0_2 = arith.constant 0 : index
    %3 = vector.load %arg2[%c0_1, %c0_2] : memref<4x512xf32, #tpu.memory_space<vmem>>, vector<4x512xf32>
    tpu.vector_store %arg2[%c0_1, %c0_2], %2 {strides = array<i32>} : memref<4x512xf32, #tpu.memory_space<vmem>>, vector<4x512xf32>,
    %cst_3 = arith.constant 1.000000e+00 : f32
    %4 = vector.broadcast %cst_3 : f32 to vector<4x512xf32>
    %5 = arith.subf %0, %4 : vector<4x512xf32>
    %c0_4 = arith.constant 0 : index
    %c0_5 = arith.constant 0 : index
    %6 = vector.load %arg3[%c0_4, %c0_5] : memref<4x512xf32, #tpu.memory_space<vmem>>, vector<4x512xf32>
    tpu.vector_store %arg3[%c0_4, %c0_5], %5 {strides = array<i32>} : memref<4x512xf32, #tpu.memory_space<vmem>>, vector<4x512xf32>,
    %cst_6 = arith.constant 3.000000e+00 : f32
    %7 = vector.broadcast %cst_6 : f32 to vector<4x512xf32>
    %8 = arith.mulf %0, %7 : vector<4x512xf32>
    %c0_7 = arith.constant 0 : index
    %c0_8 = arith.constant 0 : index
    %9 = vector.load %arg4[%c0_7, %c0_8] : memref<4x512xf32, #tpu.memory_space<vmem>>, vector<4x512xf32>
    tpu.vector_store %arg4[%c0_7, %c0_8], %8 {strides = array<i32>} : memref<4x512xf32, #tpu.memory_space<vmem>>, vector<4x512xf32>,
    %cst_9 = arith.constant 2.500000e-01 : f32
    %10 = vector.broadcast %cst_9 : f32 to vector<4x512xf32>
    %11 = arith.mulf %0, %10 : vector<4x512xf32>
    %c0_10 = arith.constant 0 : index
    %c0_11 = arith.constant 0 : index
    %12 = vector.load %arg5[%c0_10, %c0_11] : memref<4x512xf32, #tpu.memory_space<vmem>>, vector<4x512xf32>
    tpu.vector_store %arg5[%c0_10, %c0_11], %11 {strides = array<i32>} : memref<4x512xf32, #tpu.memory_space<vmem>>, vector<4x512xf32>,
    %cst_12 = arith.constant 1.000000e+00 : f32
    %13 = vector.broadcast %cst_12 : f32 to vector<4x512xf32>
    %14 = arith.cmpf ogt, %0, %13 : vector<4x512xf32>
    %15 = arith.extui %14 : vector<4x512xi1> to vector<4x512xi8>
    %c0_13 = arith.constant 0 : index
    %c0_14 = arith.constant 0 : index
    %16 = vector.load %arg6[%c0_13, %c0_14] : memref<4x512xi8, #tpu.memory_space<vmem>>, vector<4x512xi8>
    tpu.vector_store %arg6[%c0_13, %c0_14], %15 {strides = array<i32>} : memref<4x512xi8, #tpu.memory_space<vmem>>, vector<4x512xi8>,
    %cst_15 = arith.constant 5.000000e+00 : f32
    %17 = vector.broadcast %cst_15 : f32 to vector<4x512xf32>
    %18 = arith.cmpf olt, %0, %17 : vector<4x512xf32>
    %19 = arith.extui %18 : vector<4x512xi1> to vector<4x512xi8>
    %c0_16 = arith.constant 0 : index
    %c0_17 = arith.constant 0 : index
    %20 = vector.load %arg7[%c0_16, %c0_17] : memref<4x512xi8, #tpu.memory_space<vmem>>, vector<4x512xi8>
    tpu.vector_store %arg7[%c0_16, %c0_17], %19 {strides = array<i32>} : memref<4x512xi8, #tpu.memory_space<vmem>>, vector<4x512xi8>,
    return
  }
  func.func @transform_0(%arg0: i32) -> (i32, i32) {
    %c0_i32 = arith.constant 0 : i32
    %c0_i32_0 = arith.constant 0 : i32
    return %arg0, %c0_i32 : i32, i32
  }
  func.func @transform_1(%arg0: i32) -> (i32, i32) {
    %c0_i32 = arith.constant 0 : i32
    %c0_i32_0 = arith.constant 0 : i32
    return %arg0, %c0_i32 : i32, i32
  }
  func.func @transform_2(%arg0: i32) -> (i32, i32) {
    %c0_i32 = arith.constant 0 : i32
    %c0_i32_0 = arith.constant 0 : i32
    return %arg0, %c0_i32 : i32, i32
  }
  func.func @transform_3(%arg0: i32) -> (i32, i32) {
    %c0_i32 = arith.constant 0 : i32
    %c0_i32_0 = arith.constant 0 : i32
    return %arg0, %c0_i32 : i32, i32
  }
  func.func @transform_4(%arg0: i32) -> (i32, i32) {
    %c0_i32 = arith.constant 0 : i32
    %c0_i32_0 = arith.constant 0 : i32
    return %arg0, %c0_i32 : i32, i32
  }
  func.func @transform_5(%arg0: i32) -> (i32, i32) {
    %c0_i32 = arith.constant 0 : i32
    %c0_i32_0 = arith.constant 0 : i32
    return %arg0, %c0_i32 : i32, i32
  }
  func.func @transform_6(%arg0: i32) -> (i32, i32) {
    %c0_i32 = arith.constant 0 : i32
    %c0_i32_0 = arith.constant 0 : i32
    return %arg0, %c0_i32 : i32, i32
  }
}

</mosaic_0001>

<llo_original>
// kernel: pt_module_forward.1
$region0: #{pt_module_forward.1}
  #allocation0 [shape = 'u32[]', space=smem, size = 0x4, offset = 0x4, fixed_abs, tag = 'smem constant byte address 0x4 - core index']
  #allocation1 [shape = 'u32[72,128]{1,0:T(1,128)}', space=vmem, size = 0x9000, scoped, tag = 'internal scratch']
  %s0 = inlined_call_operand.vmem [shape: f32[4,512], index: 0, kind: input, shape index: {}]
  %s1 = inlined_call_operand.vmem [shape: f32[4,512], index: 1, kind: output, shape index: {0}]
  %s2 = inlined_call_operand.vmem [shape: f32[4,512], index: 2, kind: output, shape index: {1}]
  %s3 = inlined_call_operand.vmem [shape: f32[4,512], index: 3, kind: output, shape index: {2}]
  %s4 = inlined_call_operand.vmem [shape: f32[4,512], index: 4, kind: output, shape index: {3}]
  %s5 = inlined_call_operand.vmem [shape: s8[4,512], index: 5, kind: output, shape index: {4}]
  %s6 = inlined_call_operand.vmem [shape: s8[4,512], index: 6, kind: output, shape index: {5}]
  %7 = xla_tuple %s1, %s2, %s3, %s4, %s5, %s6
  %s8 = sld [smem:[#allocation0]]
  $region54: #{pt_module_forward.1} parent=0
    _
  %s10 = ssub.s32 1, %s8
  %s11 = scalar_select 0, %s10, %s8
  // Predicated region
  $region2: #{pt_module_forward.1} parent=0 // pred_check
    _
  $region3: #{pt_module_forward.1} parent=0 // pred_check_branch
    %13 = sbr.rel (0) target = $region5
  $region4: #{pt_module_forward.1} parent=0 // pred_region
    _
  $region5: #{pt_module_forward.1} parent=0 // pred_fallthru
    _
  %v16 = vld [vmem:[%s0] sm:$0xff]
  %v17 = vld [vmem:[%s0 + $0x8] sm:$0xff]
  %v18 = vadd.f32 %v16, 2.0
  %v19 = vadd.f32 %v17, 2.0
  %20 = vst [vmem:[%s1] sm:$0xff] %v18
  %21 = vst [vmem:[%s1 + $0x8] sm:$0xff] %v19
  %v22 = vsub.f32 %v16, 1.0
  %v23 = vsub.f32 %v17, 1.0
  %24 = vst [vmem:[%s2] sm:$0xff] %v22
  %25 = vst [vmem:[%s2 + $0x8] sm:$0xff] %v23
  %v26 = vmul.f32 %v16, 3.0
  %v27 = vmul.f32 %v17, 3.0
  %28 = vst [vmem:[%s3] sm:$0xff] %v26
  %29 = vst [vmem:[%s3 + $0x8] sm:$0xff] %v27
  %v30 = vmul.f32 %v16, 0.25
  %v31 = vmul.f32 %v17, 0.25
  %32 = vst [vmem:[%s4] sm:$0xff] %v30
  %33 = vst [vmem:[%s4 + $0x8] sm:$0xff] %v31
  %vm34 = vcmp.gt.f32.partialorder %v16, 1.0
  %vm35 = vcmp.gt.f32.partialorder %v17, 1.0
  %v36 = vsel %vm34, 1, 0
  %v37 = vsel %vm35, 1, 0
  %v38 = vpack.c.b16 %v37, %v36
  %v39 = vpack.c.b8 %v38, %v38
  %vm40 = vnez %v39
  %v41 = vsel %vm40, 16843009, 0
  %43 = vst [vmem:[#allocation1] ss:$9 sm:$0xff] %v41
  %v44 = vld [vmem:[#allocation1] sm:$0xff]
  %v46 = vld [vmem:[#allocation1 + $0x9] sm:$0xff]
  %v48 = vld [vmem:[#allocation1 + $0x12] sm:$0xff]
  %v50 = vld [vmem:[#allocation1 + $0x1b] sm:$0xff]
  %vm52 = vnez %v44
  %vm53 = vnez %v46
  %vm54 = vnez %v48
  %vm55 = vnez %v50
  %v56 = vsel %vm52, 16843009, 0
  %v57 = vsel %vm53, 16843009, 0
  %v58 = vsel %vm54, 16843009, 0
  %v59 = vsel %vm55, 16843009, 0
  %v60 = vrot.slane %v57, 7
  %v61 = vrot.slane %v58, 6
  %v62 = vrot.slane %v59, 5
  %vm63 = vcmask 1040384
  %v66 = vsel %vm63, %v56, %v60
  %vm67 = vcmask 1042434
  %v70 = vsel %vm67, %v61, %v62
  %vm71 = vcmask 1041408
  %v72 = vsel %vm71, %v66, %v70
  %74 = vst [vmem:[%s5] sm:$0xf] %v72
  %vm75 = vcmp.lt.f32.partialorder %v16, 5.0
  %vm76 = vcmp.lt.f32.partialorder %v17, 5.0
  %v77 = vsel %vm75, 1, 0
  %v78 = vsel %vm76, 1, 0
  %v79 = vpack.c.b16 %v78, %v77
  %v80 = vpack.c.b8 %v79, %v79
  %vm81 = vnez %v80
  %v82 = vsel %vm81, 16843009, 0
  %84 = vst [vmem:[#allocation1] ss:$9 sm:$0xff] %v82
  %v85 = vld [vmem:[#allocation1] sm:$0xff]
  %v87 = vld [vmem:[#allocation1 + $0x9] sm:$0xff]
  %v89 = vld [vmem:[#allocation1 + $0x12] sm:$0xff]
  %v91 = vld [vmem:[#allocation1 + $0x1b] sm:$0xff]
  %vm93 = vnez %v85
  %vm94 = vnez %v87
  %vm95 = vnez %v89
  %vm96 = vnez %v91
  %v97 = vsel %vm93, 16843009, 0
  %v98 = vsel %vm94, 16843009, 0
  %v99 = vsel %vm95, 16843009, 0
  %v100 = vsel %vm96, 16843009, 0
  %v101 = vrot.slane %v98, 7
  %v102 = vrot.slane %v99, 6
  %v103 = vrot.slane %v100, 5
  %v106 = vsel %vm63, %v97, %v101
  %v109 = vsel %vm67, %v102, %v103
  %v110 = vsel %vm71, %v106, %v109
  %112 = vst [vmem:[%s6] sm:$0xf] %v110
  // Predicated region
  $region6: #{pt_module_forward.1} parent=0 // pred_check
    _
  $region7: #{pt_module_forward.1} parent=0 // pred_check_branch
    %114 = sbr.rel (0) target = $region9
  $region8: #{pt_module_forward.1} parent=0 // pred_region
    _
  $region9: #{pt_module_forward.1} parent=0 // pred_fallthru
    _
  // Predicated region
  $region10: #{pt_module_forward.1} parent=0 // pred_check
    _
  $region11: #{pt_module_forward.1} parent=0 // pred_check_branch
    %116 = sbr.rel (0) target = $region13
  $region12: #{pt_module_forward.1} parent=0 // pred_region
    _
  $region13: #{pt_module_forward.1} parent=0 // pred_fallthru
    _
  // Predicated region
  $region14: #{pt_module_forward.1} parent=0 // pred_check
    _
  $region15: #{pt_module_forward.1} parent=0 // pred_check_branch
    %118 = sbr.rel (0) target = $region17
  $region16: #{pt_module_forward.1} parent=0 // pred_region
    _
  $region17: #{pt_module_forward.1} parent=0 // pred_fallthru
    _
  // Predicated region
  $region18: #{pt_module_forward.1} parent=0 // pred_check
    _
  $region19: #{pt_module_forward.1} parent=0 // pred_check_branch
    %120 = sbr.rel (0) target = $region21
  $region20: #{pt_module_forward.1} parent=0 // pred_region
    _
  $region21: #{pt_module_forward.1} parent=0 // pred_fallthru
    _
  // Predicated region
  $region22: #{pt_module_forward.1} parent=0 // pred_check
    _
  $region23: #{pt_module_forward.1} parent=0 // pred_check_branch
    %122 = sbr.rel (0) target = $region25
  $region24: #{pt_module_forward.1} parent=0 // pred_region
    _
  $region25: #{pt_module_forward.1} parent=0 // pred_fallthru
    _
  // Predicated region
  $region26: #{pt_module_forward.1} parent=0 // pred_check
    _
  $region27: #{pt_module_forward.1} parent=0 // pred_check_branch
    %124 = sbr.rel (0) target = $region29
  $region28: #{pt_module_forward.1} parent=0 // pred_region
    _
  $region29: #{pt_module_forward.1} parent=0 // pred_fallthru
    _
  // Predicated region
  $region30: #{pt_module_forward.1} parent=0 // pred_check
    _
  $region31: #{pt_module_forward.1} parent=0 // pred_check_branch
    %126 = sbr.rel (0) target = $region33
  $region32: #{pt_module_forward.1} parent=0 // pred_region
    _
  $region33: #{pt_module_forward.1} parent=0 // pred_fallthru
    _
  // Predicated region
  $region34: #{pt_module_forward.1} parent=0 // pred_check
    _
  $region35: #{pt_module_forward.1} parent=0 // pred_check_branch
    %128 = sbr.rel (0) target = $region37
  $region36: #{pt_module_forward.1} parent=0 // pred_region
    _
  $region37: #{pt_module_forward.1} parent=0 // pred_fallthru
    _
  // Predicated region
  $region38: #{pt_module_forward.1} parent=0 // pred_check
    _
  $region39: #{pt_module_forward.1} parent=0 // pred_check_branch
    %130 = sbr.rel (0) target = $region41
  $region40: #{pt_module_forward.1} parent=0 // pred_region
    _
  $region41: #{pt_module_forward.1} parent=0 // pred_fallthru
    _
  // Predicated region
  $region42: #{pt_module_forward.1} parent=0 // pred_check
    _
  $region43: #{pt_module_forward.1} parent=0 // pred_check_branch
    %132 = sbr.rel (0) target = $region45
  $region44: #{pt_module_forward.1} parent=0 // pred_region
    _
  $region45: #{pt_module_forward.1} parent=0 // pred_fallthru
    _
  // Predicated region
  $region46: #{pt_module_forward.1} parent=0 // pred_check
    _
  $region47: #{pt_module_forward.1} parent=0 // pred_check_branch
    %134 = sbr.rel (0) target = $region49
  $region48: #{pt_module_forward.1} parent=0 // pred_region
    _
  $region49: #{pt_module_forward.1} parent=0 // pred_fallthru
    _
  // Predicated region
  $region50: #{pt_module_forward.1} parent=0 // pred_check
    _
  $region51: #{pt_module_forward.1} parent=0 // pred_check_branch
    %136 = sbr.rel (0) target = $region53
  $region52: #{pt_module_forward.1} parent=0 // pred_region
    _
  $region53: #{pt_module_forward.1} parent=0 // pred_fallthru
    _

</llo_original>
